<compile_context>
chip_gen: v6e
topology: v6e:2x2x1
jax: 0.10.0
libtpu: 0.0.40
codegen_flags: <defaults>
</compile_context>

<pallas_src>
import functools

import jax
import jax.numpy as jnp
import numpy as np
from jax.experimental import pallas as pl
from jax.experimental.pallas import tpu as pltpu


def _round_up(x, m):
    return (x + m - 1) // m * m


def _generation_vmem_limit():
    """3/4 of per-core VMEM: ~48 MiB on v7x, 96 MiB on v5e/v6e."""
    cap = 64 << 20
    try:
        info = pltpu.get_tpu_info()
        cap = int(getattr(info, "vmem_capacity_bytes", cap))
    except Exception:
        pass
    return max(min(cap * 3 // 4, 96 << 20), 32 << 20)


# --------------------------------------------------------------------------- #
# Prologue: normalize once, fold 1/T into LHS, positives, zero-padded RHS.
# --------------------------------------------------------------------------- #
def _normalize_kernel(zi_ref, zj_ref, lhs_ref, rhs_ref, pos_ref, *,
                      inv_temp, batch_size, n_valid):
    B = batch_size
    n_pad = rhs_ref.shape[0]
    d = zi_ref.shape[1]

    def _norm(x):
        sq = jnp.sum(x * x, axis=-1, keepdims=True)
        # F.normalize(dim=-1): x / max(||x||, 1e-12) == x * rsqrt(max(||x||^2, 1e-24))
        return x * jax.lax.rsqrt(jnp.maximum(sq, 1e-24))

    ni = _norm(zi_ref[...].astype(jnp.float32))          # (B, D)
    nj = _norm(zj_ref[...].astype(jnp.float32))          # (B, D)

    # LHS rows carry the 1/temperature scale (single rounding into mm dtype).
    lhs_ref[pl.ds(0, B), :] = (ni * inv_temp).astype(lhs_ref.dtype)
    lhs_ref[pl.ds(B, B), :] = (nj * inv_temp).astype(lhs_ref.dtype)

    # RHS: un-scaled normalized rows; zero rows beyond N keep the similarity
    # slab lane dense with exactly-zero padding columns.
    rhs_ref[pl.ds(0, B), :] = ni.astype(rhs_ref.dtype)
    rhs_ref[pl.ds(B, B), :] = nj.astype(rhs_ref.dtype)
    if n_pad > n_valid:
        rhs_ref[pl.ds(n_valid, n_pad - n_valid), :] = jnp.zeros(
            (n_pad - n_valid, d), rhs_ref.dtype)

    # Positives once, in f32: pos[i] = pos[B+i] = (1/T) * <n_i, n_j>.
    p = (jnp.sum(ni * nj, axis=-1, keepdims=True) * inv_temp).astype(pos_ref.dtype)
    pos_ref[pl.ds(0, B), :] = p
    pos_ref[pl.ds(B, B), :] = p


# --------------------------------------------------------------------------- #
# Main kernel: one (tm, Npad) row tile of logits (already divided by T).
# --------------------------------------------------------------------------- #
def _logits_kernel(lhs_ref, rhs_ref, pos_ref, out_ref, *,
                   batch_size, n_valid, pad_fill):
    B = batch_size
    N = n_valid
    tm = lhs_ref.shape[0]
    n_pad = rhs_ref.shape[0]

    # MXU: (tm, D) . (Npad, D)^T -> (tm, Npad), f32 accumulation.
    sim = jax.lax.dot_general(
        lhs_ref[...], rhs_ref[...],
        dimension_numbers=(((1,), (1,)), ((), ())),
        preferred_element_type=jnp.float32)

    # Index math as narrow column / row vectors (no full-width int32 slabs);
    # the compares below broadcast (tm,1) against (1,n_pad).
    row0 = pl.program_id(0) * tm
    row = row0 + jax.lax.broadcasted_iota(jnp.int32, (tm, 1), 0)   # (tm, 1)
    pos_col = jnp.where(row < B, row + B, row - B)                 # other view
    lo = jnp.minimum(row, pos_col)                                 # (tm, 1)
    hi = jnp.maximum(row, pos_col)                                 # (tm, 1)
    col = jax.lax.broadcasted_iota(jnp.int32, (1, n_pad), 1)       # (1, n_pad)

    # Packed negatives: dropping the diagonal and the positive column shifts
    # every surviving negative by 0, -1 or -2 columns, i.e. for output col t:
    #   t <= lo       -> sim[:, t - 1]
    #   lo < t < hi   -> sim[:, t]
    #   t >= hi       -> sim[:, t + 1]
    # Both shifted views are circular lane rotations on the XLU (free slot).
    roll_r = pltpu.roll(sim, shift=1, axis=1)            # [:, t] = sim[:, t - 1]
    roll_l = pltpu.roll(sim, shift=n_pad - 1, axis=1)    # [:, t] = sim[:, t + 1]

    out = jnp.where(col <= lo, roll_r, sim)
    out = jnp.where(col >= hi, roll_l, out)
    # Column 0: the positive, computed once in the prologue ((tm,1) broadcast).
    out = jnp.where(col == 0, pos_ref[...], out)
    if pad_fill is not None:
        # Only needed when the caller consumes the lane-dense padded slab
        # directly (e.g. fused softmax-CE): fill pad columns with -inf-ish.
        out = jnp.where(col >= N - 1, jnp.float32(pad_fill), out)
    out_ref[...] = out.astype(out_ref.dtype)


# --------------------------------------------------------------------------- #
# Tile-size selection with explicit VMEM accounting.
# --------------------------------------------------------------------------- #
def _pick_row_tile(n_rows, n_pad, d, mm_bytes, out_bytes, vmem_limit_bytes,
                   rhs_buffers=2):
    d_pad = _round_up(d, 128)                      # lane-padded VMEM footprint
    rhs_bytes = rhs_buffers * n_pad * d_pad * mm_bytes   # resident RHS buffer(s)
    budget = vmem_limit_bytes - rhs_bytes - (4 << 20)    # headroom for scratch
    for tm in (1024, 512, 256, 128, 64, 32, 16, 8):
        if n_rows % tm:
            continue
        per_tile = (2 * tm * d_pad * mm_bytes      # double-buffered LHS tile
                    + 2 * tm * 128 * 4             # double-buffered positives
                    + 2 * tm * n_pad * out_bytes   # double-buffered output tile
                    + 6 * tm * n_pad * 4)          # epilogue f32/bool temps
        if per_tile <= budget:
            return tm
    return 8


# --------------------------------------------------------------------------- #
# Wrapper
# --------------------------------------------------------------------------- #
def info_nce_loss(z_i, z_j, *, temperature, matmul_dtype=jnp.bfloat16,
                  logits_dtype=jnp.float32, return_padded=False,
                  rhs_buffer_count=2, vmem_limit_bytes=None):
    """Returns (logits, labels) matching Info_NCE_loss.forward.

    logits: (2B, 2B-1) = [positive | negatives in original column order] / T.
            With return_padded=True the lane-dense (2B, Npad) slab is returned
            instead (no wrapper-side slice copy); its pad columns are filled
            with -1e30 so a fused softmax-CE consumer stays correct.
    labels: (2B,) int32 zeros (torch emits int64; values are identical).
    """
    assert z_i.shape == z_j.shape and z_i.ndim == 2
    B, D = z_i.shape
    # TODO(synk): pad rows for batch sizes that are not a multiple of 8 (needed
    # for sublane-aligned two-view writes); SimCLR batches are large and even.
    assert B % 8 == 0, "batch_size must be a multiple of 8"
    N = 2 * B
    n_pad = _round_up(N, 128)                 # lane-dense sim / logits width
    inv_temp = float(1.0 / float(temperature))

    if vmem_limit_bytes is None:
        vmem_limit_bytes = _generation_vmem_limit()
    mm_bytes = jnp.dtype(matmul_dtype).itemsize
    out_bytes = jnp.dtype(logits_dtype).itemsize

    # -- prologue: normalize once, fold 1/T into LHS, positives, padded RHS ----
    # TODO(synk): for very large B*D (>~4M elements) give this a simple row grid;
    # the explicit vmem_limit below is sufficient for typical SimCLR sizes.
    lhs, rhs, pos = pl.pallas_call(
        functools.partial(_normalize_kernel, inv_temp=inv_temp,
                          batch_size=B, n_valid=N),
        out_shape=(jax.ShapeDtypeStruct((N, D), matmul_dtype),
                   jax.ShapeDtypeStruct((n_pad, D), matmul_dtype),
                   jax.ShapeDtypeStruct((N, 1), jnp.float32)),
        compiler_params=pltpu.CompilerParams(
            vmem_limit_bytes=vmem_limit_bytes),
    )(z_i, z_j)

    # -- main: row-tiled similarity + roll/mask compaction ---------------------
    tm = _pick_row_tile(N, n_pad, D, mm_bytes, out_bytes, vmem_limit_bytes,
                        rhs_buffers=rhs_buffer_count)
    rhs_spec_kwargs = {}
    if rhs_buffer_count == 1:
        # Constant index_map -> the RHS never needs a second pipeline buffer.
        rhs_spec_kwargs["pipeline_mode"] = pl.Buffered(1)
    pad_fill = -1e30 if return_padded else None

    out_padded = pl.pallas_call(
        functools.partial(_logits_kernel, batch_size=B, n_valid=N,
                          pad_fill=pad_fill),
        grid=(N // tm,),
        in_specs=[
            pl.BlockSpec((tm, D), lambda i: (i, 0)),      # row tile of LHS
            pl.BlockSpec((n_pad, D), lambda i: (0, 0),    # RHS resident
                         **rhs_spec_kwargs),
            pl.BlockSpec((tm, 1), lambda i: (i, 0)),      # prefetched positives
        ],
        out_specs=pl.BlockSpec((tm, n_pad), lambda i: (i, 0)),
        out_shape=jax.ShapeDtypeStruct((N, n_pad), logits_dtype),
        compiler_params=pltpu.CompilerParams(
            dimension_semantics=("parallel",),            # shard rows across TCs
            vmem_limit_bytes=vmem_limit_bytes),
    )(lhs, rhs, pos)

    if return_padded:
        logits = out_padded                               # lane dense, pad = -1e30
    else:
        logits = out_padded[:, :N - 1]                    # reference shape
    labels = jnp.zeros((N,), dtype=jnp.int32)             # torch: int64 zeros
    return logits, labels


# --------------------------------------------------------------------------- #
# Pure-numpy reference replicating the PyTorch forward exactly.
# --------------------------------------------------------------------------- #
def _reference(z_i, z_j, temperature):
    B = z_i.shape[0]
    N = 2 * B
    zi = np.asarray(z_i, np.float32)
    zj = np.asarray(z_j, np.float32)

    def norm(x):
        n = np.linalg.norm(x, axis=-1, keepdims=True)
        return x / np.maximum(n, 1e-12)

    feats = np.concatenate([norm(zi), norm(zj)], axis=0)
    sim = feats @ feats.T
    lbl = np.concatenate([np.arange(B), np.arange(B)])
    lbl_mat = (lbl[None, :] == lbl[:, None]).astype(np.float32)
    mask = np.eye(N, dtype=bool)
    lbl_nd = lbl_mat[~mask].reshape(N, -1)
    sim_nd = sim[~mask].reshape(N, -1)
    pos = sim_nd[lbl_nd.astype(bool)].reshape(N, -1)
    neg = sim_nd[~lbl_nd.astype(bool)].reshape(N, -1)
    logits = np.concatenate([pos, neg], axis=1) / temperature
    labels = np.zeros((N,), np.int64)
    return logits, labels


if __name__ == "__main__":
    batch_size, hidden = 8, 32
    temperature = 0.5

    key = jax.random.PRNGKey(0)
    k1, k2 = jax.random.split(key)
    z_i = jax.random.normal(k1, (batch_size, hidden), dtype=jnp.float32)
    z_j = jax.random.normal(k2, (batch_size, hidden), dtype=jnp.float32)

    ref_logits, ref_labels = _reference(z_i, z_j, temperature)
    N = 2 * batch_size

    # f32 matmul path: verifies normalization + roll/mask packing closely.
    logits_f32, labels = info_nce_loss(z_i, z_j, temperature=temperature,
                                       matmul_dtype=jnp.float32)
    logits_f32 = jax.block_until_ready(logits_f32)
    np.testing.assert_allclose(np.asarray(logits_f32), ref_logits,
                               rtol=3e-3, atol=3e-3)
    assert logits_f32.shape == (N, N - 1)

    # bf16 matmul path (default, MXU-native, f32 accumulation).
    logits_bf16, labels = info_nce_loss(z_i, z_j, temperature=temperature)
    logits_bf16 = jax.block_until_ready(logits_bf16)
    labels = jax.block_until_ready(labels)
    np.testing.assert_allclose(np.asarray(logits_bf16), ref_logits,
                               rtol=6e-2, atol=6e-2)

    # Lane-dense padded path (no wrapper slice copy; pad filled with -1e30).
    logits_pad, _ = info_nce_loss(z_i, z_j, temperature=temperature,
                                  matmul_dtype=jnp.float32, return_padded=True)
    logits_pad = jax.block_until_ready(logits_pad)
    np.testing.assert_allclose(np.asarray(logits_pad[:, :N - 1]), ref_logits,
                               rtol=3e-3, atol=3e-3)
    assert np.all(np.asarray(logits_pad[:, N - 1:]) <= -1e29)

    np.testing.assert_array_equal(np.asarray(labels), ref_labels.astype(np.int32))

    print("KERNEL_OK")
</pallas_src>

<mosaic_0001>
module attributes {stable_mosaic.version = 11 : i64} {
  func.func @_normalize_kernel(%arg0: memref<8x32xf32, #tpu.memory_space<vmem>>, %arg1: memref<8x32xf32, #tpu.memory_space<vmem>>, %arg2: memref<16x32xf32, #tpu.memory_space<vmem>>, %arg3: memref<128x32xf32, #tpu.memory_space<vmem>>, %arg4: memref<16x1xf32, #tpu.memory_space<vmem>>) attributes {dimension_semantics = [], scalar_prefetch = 0 : i64, scratch_operands = 0 : i64, tpu.core_type = #tpu.core_type<tc>} {
    %c0 = arith.constant 0 : index
    %c0_0 = arith.constant 0 : index
    %0 = vector.load %arg0[%c0, %c0_0] : memref<8x32xf32, #tpu.memory_space<vmem>>, vector<8x32xf32>
    %1 = arith.mulf %0, %0 : vector<8x32xf32>
    %cst = arith.constant dense<0.000000e+00> : vector<8xf32>
    %2 = vector.multi_reduction <add>, %1, %cst [1] : vector<8x32xf32> to vector<8xf32>
    %3 = vector.shape_cast %2 : vector<8xf32> to vector<8x1xf32>
    %cst_1 = arith.constant 1.000000e-24 : f32
    %4 = vector.broadcast %cst_1 : f32 to vector<8x1xf32>
    %5 = arith.maximumf %3, %4 : vector<8x1xf32>
    %6 = math.rsqrt %5 : vector<8x1xf32>
    %7 = vector.broadcast %6 : vector<8x1xf32> to vector<8x32xf32>
    %8 = arith.mulf %0, %7 : vector<8x32xf32>
    %c0_2 = arith.constant 0 : index
    %c0_3 = arith.constant 0 : index
    %9 = vector.load %arg1[%c0_2, %c0_3] : memref<8x32xf32, #tpu.memory_space<vmem>>, vector<8x32xf32>
    %10 = arith.mulf %9, %9 : vector<8x32xf32>
    %cst_4 = arith.constant dense<0.000000e+00> : vector<8xf32>
    %11 = vector.multi_reduction <add>, %10, %cst_4 [1] : vector<8x32xf32> to vector<8xf32>
    %12 = vector.shape_cast %11 : vector<8xf32> to vector<8x1xf32>
    %cst_5 = arith.constant 1.000000e-24 : f32
    %13 = vector.broadcast %cst_5 : f32 to vector<8x1xf32>
    %14 = arith.maximumf %12, %13 : vector<8x1xf32>
    %15 = math.rsqrt %14 : vector<8x1xf32>
    %16 = vector.broadcast %15 : vector<8x1xf32> to vector<8x32xf32>
    %17 = arith.mulf %9, %16 : vector<8x32xf32>
    %cst_6 = arith.constant 2.000000e+00 : f32
    %18 = vector.broadcast %cst_6 : f32 to vector<8x32xf32>
    %19 = arith.mulf %8, %18 : vector<8x32xf32>
    %c0_7 = arith.constant 0 : index
    %c0_8 = arith.constant 0 : index
    %20 = vector.load %arg2[%c0_7, %c0_8] : memref<16x32xf32, #tpu.memory_space<vmem>>, vector<8x32xf32>
    tpu.vector_store %arg2[%c0_7, %c0_8], %19 {strides = array<i32>} : memref<16x32xf32, #tpu.memory_space<vmem>>, vector<8x32xf32>,
    %cst_9 = arith.constant 2.000000e+00 : f32
    %21 = vector.broadcast %cst_9 : f32 to vector<8x32xf32>
    %22 = arith.mulf %17, %21 : vector<8x32xf32>
    %c8 = arith.constant 8 : index
    %c0_10 = arith.constant 0 : index
    %23 = vector.load %arg2[%c8, %c0_10] : memref<16x32xf32, #tpu.memory_space<vmem>>, vector<8x32xf32>
    tpu.vector_store %arg2[%c8, %c0_10], %22 {strides = array<i32>} : memref<16x32xf32, #tpu.memory_space<vmem>>, vector<8x32xf32>,
    %c0_11 = arith.constant 0 : index
    %c0_12 = arith.constant 0 : index
    %24 = vector.load %arg3[%c0_11, %c0_12] : memref<128x32xf32, #tpu.memory_space<vmem>>, vector<8x32xf32>
    tpu.vector_store %arg3[%c0_11, %c0_12], %8 {strides = array<i32>} : memref<128x32xf32, #tpu.memory_space<vmem>>, vector<8x32xf32>,
    %c8_13 = arith.constant 8 : index
    %c0_14 = arith.constant 0 : index
    %25 = vector.load %arg3[%c8_13, %c0_14] : memref<128x32xf32, #tpu.memory_space<vmem>>, vector<8x32xf32>
    tpu.vector_store %arg3[%c8_13, %c0_14], %17 {strides = array<i32>} : memref<128x32xf32, #tpu.memory_space<vmem>>, vector<8x32xf32>,
    %cst_15 = arith.constant 0.000000e+00 : f32
    %26 = vector.broadcast %cst_15 : f32 to vector<112x32xf32>
    %c16 = arith.constant 16 : index
    %c0_16 = arith.constant 0 : index
    %27 = vector.load %arg3[%c16, %c0_16] : memref<128x32xf32, #tpu.memory_space<vmem>>, vector<112x32xf32>
    tpu.vector_store %arg3[%c16, %c0_16], %26 {strides = array<i32>} : memref<128x32xf32, #tpu.memory_space<vmem>>, vector<112x32xf32>,
    %28 = arith.mulf %8, %17 : vector<8x32xf32>
    %cst_17 = arith.constant dense<0.000000e+00> : vector<8xf32>
    %29 = vector.multi_reduction <add>, %28, %cst_17 [1] : vector<8x32xf32> to vector<8xf32>
    %30 = vector.shape_cast %29 : vector<8xf32> to vector<8x1xf32>
    %cst_18 = arith.constant 2.000000e+00 : f32
    %31 = vector.broadcast %cst_18 : f32 to vector<8x1xf32>
    %32 = arith.mulf %30, %31 : vector<8x1xf32>
    %c0_19 = arith.constant 0 : index
    %c0_20 = arith.constant 0 : index
    %33 = vector.load %arg4[%c0_19, %c0_20] : memref<16x1xf32, #tpu.memory_space<vmem>>, vector<8x1xf32>
    tpu.vector_store %arg4[%c0_19, %c0_20], %32 {strides = array<i32>} : memref<16x1xf32, #tpu.memory_space<vmem>>, vector<8x1xf32>,
    %c8_21 = arith.constant 8 : index
    %c0_22 = arith.constant 0 : index
    %34 = vector.load %arg4[%c8_21, %c0_22] : memref<16x1xf32, #tpu.memory_space<vmem>>, vector<8x1xf32>
    tpu.vector_store %arg4[%c8_21, %c0_22], %32 {strides = array<i32>} : memref<16x1xf32, #tpu.memory_space<vmem>>, vector<8x1xf32>,
    return
  }
}

</mosaic_0001>

<llo_original>
// kernel: tpu_custom_call.1
$region0: #{tpu_custom_call.1}
  #allocation0 [shape = 'u32[]', space=smem, size = 0x4, offset = 0x4, fixed_abs, tag = 'smem constant byte address 0x4 - core index']
  #allocation1 [shape = 'u32[144,128]{1,0:T(1,128)}', space=vmem, size = 0x12000, scoped, tag = 'internal scratch']
  %s0 = inlined_call_operand.hbm [shape: f32[8,32], index: 0, kind: input, shape index: {}]
  %s1 = inlined_call_operand.hbm [shape: f32[8,32], index: 1, kind: input, shape index: {}]
  %s2 = inlined_call_operand.hbm [shape: f32[16,32], index: 2, kind: output, shape index: {0}]
  %s3 = inlined_call_operand.vmem [shape: f32[128,32], index: 3, kind: output, shape index: {1}]
  %s4 = inlined_call_operand.vmem [shape: f32[16,1], index: 4, kind: output, shape index: {2}]
  %5 = xla_tuple %s2, %s3, %s4
  %s6 = sld [smem:[#allocation0]]
  $region42: #{tpu_custom_call.1} parent=0
    _
  %s8 = ssub.s32 1, %s6
  %s9 = scalar_select 0, %s8, %s6
  $region1: #{tpu_custom_call.1} parent=0
    #allocation2 [shape = 'u8[4096]{0}', space=vmem, size = 0x1000, scoped, tag = 'input window, operand 0, single buffered']
    #allocation3 [shape = 's32[1]{0}', space=sflag, size = 0x4, scoped, tag = 'scoped memory for tpu_custom_call.1']
    #allocation4 [shape = 's32[1]{0}', space=sflag, size = 0x4, scoped, tag = 'scoped memory for tpu_custom_call.1']
    #allocation5 [shape = 'u8[4096]{0}', space=vmem, size = 0x1000, scoped, tag = 'input window, operand 1, single buffered']
    #allocation6 [shape = 's32[1]{0}', space=sflag, size = 0x4, scoped, tag = 'scoped memory for tpu_custom_call.1']
    #allocation7 [shape = 'u8[8192]{0}', space=vmem, size = 0x2000, scoped, tag = 'output window, operand 0, single buffered']
    %10 = vsyncpa [#allocation3], 0
    %11 = vsyncpa [#allocation6], 0
    %12 = vsyncpa [#allocation4], 0
    // Predicated region
    $region2: #{tpu_custom_call.1} parent=1 // pred_check
      _
    $region3: #{tpu_custom_call.1} parent=1 // pred_check_branch
      %14 = sbr.rel (0) target = $region5
    $region4: #{tpu_custom_call.1} parent=1 // pred_region
      %s16 = ssub.s32 128, 128
      %17 = vsyncadd [#allocation3], %s16
      %s19 = sshll.u32 [#allocation2], 4
      %s20 = int_to_ptr.vmem [resolvable:$true] %s19
      %22 = dma.hbm_to_vmem [thread:$0]  %s0, 128, %s20, [#allocation3]
    $region5: #{tpu_custom_call.1} parent=1 // pred_fallthru
      _
    // Predicated region
    $region6: #{tpu_custom_call.1} parent=1 // pred_check
      _
    $region7: #{tpu_custom_call.1} parent=1 // pred_check_branch
      %24 = sbr.rel (0) target = $region9
    $region8: #{tpu_custom_call.1} parent=1 // pred_region
      %s26 = ssub.s32 128, 128
      %27 = vsyncadd [#allocation6], %s26
      %s29 = sshll.u32 [#allocation5], 4
      %s30 = int_to_ptr.vmem [resolvable:$true] %s29
      %32 = dma.hbm_to_vmem [thread:$0]  %s1, 128, %s30, [#allocation6]
    $region9: #{tpu_custom_call.1} parent=1 // pred_fallthru
      _
    // Predicated region
    $region10: #{tpu_custom_call.1} parent=1 // pred_check
      _
    $region11: #{tpu_custom_call.1} parent=1 // pred_check_branch
      %34 = sbr.rel (0) target = $region13
    $region12: #{tpu_custom_call.1} parent=1 // pred_region
      %35 = dma.done [#allocation3], 128
    $region13: #{tpu_custom_call.1} parent=1 // pred_fallthru
      _
    // Predicated region
    $region14: #{tpu_custom_call.1} parent=1 // pred_check
      _
    $region15: #{tpu_custom_call.1} parent=1 // pred_check_branch
      %37 = sbr.rel (0) target = $region17
    $region16: #{tpu_custom_call.1} parent=1 // pred_region
      %38 = dma.done [#allocation6], 128
    $region17: #{tpu_custom_call.1} parent=1 // pred_fallthru
      _
    %v39 = vld [vmem:[#allocation2] sm:$0xff]
    %v40 = vmul.f32 %v39, %v39
    %vm41 = vcmask 261120
    %v42 = vsel %vm41, %v40, 0.0
    %43 = vadd.xlane.f32.xlu0 %v42
    %v44 = vpop.xlane.xlu0 %43
    %v45 = vmax.f32 %v44, 1e-24
    %v46 = vrsqrt.pop %v45
    %v47 = vmul.f32 %v39, %v46
    %v48 = vld [vmem:[#allocation5] sm:$0xff]
    %v49 = vmul.f32 %v48, %v48
    %v50 = vsel %vm41, %v49, 0.0
    %51 = vadd.xlane.f32.xlu0 %v50
    %v52 = vpop.xlane.xlu0 %51
    %v53 = vmax.f32 %v52, 1e-24
    %v54 = vrsqrt.pop %v53
    %v55 = vmul.f32 %v48, %v54
    %v56 = vmul.f32 %v47, 2.0
    %57 = vst.msk [vmem:[#allocation7] sm:$0xff] %vm41, %v56
    %v58 = vmul.f32 %v55, 2.0
    %59 = vst.msk [vmem:[#allocation7 + $0x8] sm:$0xff] %vm41, %v58
    %60 = vst.msk [vmem:[%s3] sm:$0xff] %vm41, %v47
    %61 = vst.msk [vmem:[%s3 + $0x8] sm:$0xff] %vm41, %v55
    %62 = vst.msk [vmem:[%s3 + $0x10] sm:$0xff] %vm41, 0.0
    %63 = vst.msk [vmem:[%s3 + $0x18] sm:$0xff] %vm41, 0.0
    %64 = vst.msk [vmem:[%s3 + $0x20] sm:$0xff] %vm41, 0.0
    %65 = vst.msk [vmem:[%s3 + $0x28] sm:$0xff] %vm41, 0.0
    %66 = vst.msk [vmem:[%s3 + $0x30] sm:$0xff] %vm41, 0.0
    %67 = vst.msk [vmem:[%s3 + $0x38] sm:$0xff] %vm41, 0.0
    %68 = vst.msk [vmem:[%s3 + $0x40] sm:$0xff] %vm41, 0.0
    %69 = vst.msk [vmem:[%s3 + $0x48] sm:$0xff] %vm41, 0.0
    %70 = vst.msk [vmem:[%s3 + $0x50] sm:$0xff] %vm41, 0.0
    %71 = vst.msk [vmem:[%s3 + $0x58] sm:$0xff] %vm41, 0.0
    %72 = vst.msk [vmem:[%s3 + $0x60] sm:$0xff] %vm41, 0.0
    %73 = vst.msk [vmem:[%s3 + $0x68] sm:$0xff] %vm41, 0.0
    %74 = vst.msk [vmem:[%s3 + $0x70] sm:$0xff] %vm41, 0.0
    %75 = vst.msk [vmem:[%s3 + $0x78] sm:$0xff] %vm41, 0.0
    %v76 = vmul.f32 %v47, %v55
    %v77 = vsel %vm41, %v76, 0.0
    %78 = vadd.xlane.f32.xlu0 %v77
    %v79 = vpop.xlane.xlu0 %78
    %v80 = vmul.f32 %v79, 2.0
    %vm81 = vcmask 7168
    %82 = vst.msk [vmem:[%s4] sm:$0xff] %vm81, %v80
    %83 = vst.msk [vmem:[%s4 + $0x8] sm:$0xff] %vm81, %v80
    // Predicated region
    $region18: #{tpu_custom_call.1} parent=1 // pred_check
      _
    $region19: #{tpu_custom_call.1} parent=1 // pred_check_branch
      %85 = sbr.rel (0) target = $region21
    $region20: #{tpu_custom_call.1} parent=1 // pred_region
      %s87 = ssub.s32 256, 256
      %88 = vsyncadd [#allocation4], %s87
      %s89 = sshll.u32 [#allocation7], 4
      %s90 = int_to_ptr.vmem [resolvable:$true] %s89
      %95 = dma.vmem_to_hbm [thread:$0]  %s90, 256, %s2, [#allocation4], 128, 128, 8
    $region21: #{tpu_custom_call.1} parent=1 // pred_fallthru
      _
    // Predicated region
    $region22: #{tpu_custom_call.1} parent=1 // pred_check
      _
    $region23: #{tpu_custom_call.1} parent=1 // pred_check_branch
      %97 = sbr.rel (0) target = $region25
    $region24: #{tpu_custom_call.1} parent=1 // pred_region
      _
    $region25: #{tpu_custom_call.1} parent=1 // pred_fallthru
      _
    // Predicated region
    $region26: #{tpu_custom_call.1} parent=1 // pred_check
      _
    $region27: #{tpu_custom_call.1} parent=1 // pred_check_branch
      %99 = sbr.rel (0) target = $region29
    $region28: #{tpu_custom_call.1} parent=1 // pred_region
      _
    $region29: #{tpu_custom_call.1} parent=1 // pred_fallthru
      _
    // Predicated region
    $region30: #{tpu_custom_call.1} parent=1 // pred_check
      _
    $region31: #{tpu_custom_call.1} parent=1 // pred_check_branch
      %101 = sbr.rel (0) target = $region33
    $region32: #{tpu_custom_call.1} parent=1 // pred_region
      %102 = dma.done [#allocation4], 256
    $region33: #{tpu_custom_call.1} parent=1 // pred_fallthru
      _
    // Predicated region
    $region34: #{tpu_custom_call.1} parent=1 // pred_check
      _
    $region35: #{tpu_custom_call.1} parent=1 // pred_check_branch
      %104 = sbr.rel (0) target = $region37
    $region36: #{tpu_custom_call.1} parent=1 // pred_region
      _
    $region37: #{tpu_custom_call.1} parent=1 // pred_fallthru
      _
    // Predicated region
    $region38: #{tpu_custom_call.1} parent=1 // pred_check
      _
    $region39: #{tpu_custom_call.1} parent=1 // pred_check_branch
      %106 = sbr.rel (0) target = $region41
    $region40: #{tpu_custom_call.1} parent=1 // pred_region
      _
    $region41: #{tpu_custom_call.1} parent=1 // pred_fallthru
      _
    %107 = vsyncpa [#allocation3], 1
    %108 = vsyncpa [#allocation6], 1
    %109 = vsyncpa [#allocation4], 1

</llo_original>
